<compile_context>
chip_gen: v7x
topology: tpu7x:2x2x1
jax: 0.10.0
libtpu: 0.0.40
codegen_flags: <defaults>
</compile_context>

<pallas_src>
import math
import functools

import jax
import jax.numpy as jnp
from jax import lax
from jax.experimental import pallas as pl
from jax.experimental.pallas import tpu as pltpu


# ----------------------------------------------------------------------------- kernel
def _attn_kernel(x_ref, wqkv_ref, wo_ref, o_ref, *, num_heads: int, dim_heads: int):
    # x_ref:    (bt, C, P)   bt batch elements per grid step
    # wqkv_ref: (P, 3*Dh)    fused, pre-transposed QKV weight
    # wo_ref:   (Dh, P)      pre-transposed output-projection weight
    # o_ref:    (bt, C, P)
    bt, C, P = x_ref.shape
    Dh = num_heads * dim_heads

    x = x_ref[...]                                   # native dtype, (bt, C, P)
    x2 = x.reshape(bt * C, P)
    mm_dtype = wqkv_ref.dtype
    x2m = x2 if x2.dtype == mm_dtype else x2.astype(mm_dtype)

    # Fused QKV projection: one MXU weight push over K = P for M = bt*C rows.
    qkv = jnp.dot(x2m, wqkv_ref[...], preferred_element_type=jnp.float32)  # (bt*C, 3*Dh)
    q = qkv[:, 0 * Dh:1 * Dh].reshape(bt, C, Dh)
    k = qkv[:, 1 * Dh:2 * Dh].reshape(bt, C, Dh)
    v = qkv[:, 2 * Dh:3 * Dh].reshape(bt, C, Dh)

    scale = 1.0 / math.sqrt(dim_heads)
    out = None                                       # f32 accumulator, (bt*C, P)
    for h in range(num_heads):                       # static unroll (num_heads small)
        lo = h * dim_heads
        hi = lo + dim_heads
        qh = q[:, :, lo:hi]                          # (bt, C, d)
        kh = k[:, :, lo:hi]                          # (bt, C, d)
        vh = v[:, :, lo:hi]                          # (bt, C, d)

        # s[b,i,j] = qh[b,i,:] . kh[b,j,:]  -- transpose absorbed into dot_general.
        s = lax.dot_general(qh, kh, (((2,), (2,)), ((0,), (0,))),
                            preferred_element_type=jnp.float32) * scale   # (bt, C, C)
        s = s - jnp.max(s, axis=-1, keepdims=True)
        p = jnp.exp(s)
        l = jnp.sum(p, axis=-1, keepdims=True)
        inv = pl.reciprocal(l, approx=True)          # EUP slot (≈ free)
        inv = inv * (2.0 - l * inv)                  # one Newton step -> full f32 accuracy
        p = p * inv                                  # softmax over last dim

        oh = lax.dot_general(p, vh, (((2,), (1,)), ((0,), (0,))),
                             preferred_element_type=jnp.float32)          # (bt, C, d)

        # Fold W_o per head and accumulate the lane-dense (., P) result
        # (replaces concatenate + single att @ W_o).
        oh2 = oh.reshape(bt * C, dim_heads)
        oh2 = oh2 if oh2.dtype == wo_ref.dtype else oh2.astype(wo_ref.dtype)
        contrib = jnp.dot(oh2, wo_ref[lo:hi, :],
                          preferred_element_type=jnp.float32)             # (bt*C, P)
        out = contrib if out is None else out + contrib

    # Residual add of ChannelAttentionBlock (dropout p=0.0 -> identity).
    out = out.reshape(bt, C, P) + x.astype(jnp.float32)
    # TODO(synk): GroupNormalX(dim) is not defined in the provided spec; the final
    # normalization is intentionally left out of this kernel.
    o_ref[...] = out.astype(o_ref.dtype)


# ----------------------------------------------------------------------------- wrapper
def prepare_weights(w_q, w_k, w_v, w_o, compute_dtype=None):
    """Pack weights ONCE (outside the hot path).  Inputs use PyTorch Linear
    layout: w_q/w_k/w_v (Dh, P), w_o (P, Dh).  Returns (P, 3*Dh) and (Dh, P)."""
    w_qkv_t = jnp.concatenate([w_q, w_k, w_v], axis=0).T   # (P, 3*Dh)
    w_o_t = w_o.T                                          # (Dh, P)
    if compute_dtype is not None:                          # e.g. jnp.bfloat16 on v6e/v7x
        w_qkv_t = w_qkv_t.astype(compute_dtype)
        w_o_t = w_o_t.astype(compute_dtype)
    return w_qkv_t, w_o_t


def _pick_batch_tile(B: int, C: int, P: int, itemsize: int) -> int:
    """Largest divisor of B such that (a) >= 2 grid steps remain when B >= 2 (so
    both v7x TensorCores get work) and (b) the double-buffered in+out blocks
    stay well under the default scoped-VMEM limit on every generation."""
    budget = 16 * 1024 * 1024                       # conservative vs 32 MiB scoped default
    max_bt = max(1, B // 2) if B >= 2 else 1
    best = 1
    for bt in range(1, max_bt + 1):
        if B % bt != 0:
            continue
        if 2 * 2 * bt * C * P * itemsize > budget:  # 2 bufs x (in + out) blocks
            break
        best = bt
        if bt * C >= 256:                           # MXU M dim already filled (v6e/v7x)
            break
    return best


def channel_attention_block(x, w_qkv_t, w_o_t, num_heads: int, dim_heads: int,
                            *, batch_tile: int | None = None):
    """x: (B, C, H, W); w_qkv_t: (P, 3*Dh); w_o_t: (Dh, P) from prepare_weights."""
    B, C, H, W = x.shape
    P = H * W
    Dh = num_heads * dim_heads
    assert w_qkv_t.shape == (P, 3 * Dh) and w_o_t.shape == (Dh, P)

    x_flat = x.reshape(B, C, P)
    bt = batch_tile if batch_tile is not None else _pick_batch_tile(
        B, C, P, jnp.dtype(x.dtype).itemsize)
    assert B % bt == 0

    kernel = functools.partial(_attn_kernel, num_heads=num_heads, dim_heads=dim_heads)

    out = pl.pallas_call(
        kernel,
        out_shape=jax.ShapeDtypeStruct((B, C, P), x.dtype),
        grid_spec=pltpu.PrefetchScalarGridSpec(
            num_scalar_prefetch=0,
            grid=(B // bt,),
            in_specs=[
                pl.BlockSpec((bt, C, P), lambda b: (b, 0, 0)),
                pl.BlockSpec((P, 3 * Dh), lambda b: (0, 0)),   # resident weights
                pl.BlockSpec((Dh, P), lambda b: (0, 0)),
            ],
            out_specs=pl.BlockSpec((bt, C, P), lambda b: (b, 0, 0)),
        ),
        compiler_params=pltpu.CompilerParams(
            dimension_semantics=("parallel",)),
    )(x_flat, w_qkv_t, w_o_t)

    return out.reshape(B, C, H, W)


# ----------------------------------------------------------------------------- reference
def _reference(x, w_q, w_k, w_v, w_o, num_heads, dim_heads):
    """Pure-JAX reference mirroring the PyTorch module (attention + residual)."""
    B, C, H, W = x.shape
    P = H * W
    xf = x.reshape(B, C, P)
    q = xf @ w_q.T
    k = xf @ w_k.T
    v = xf @ w_v.T

    def apart(t):
        t = t.reshape(B, C, num_heads, dim_heads).transpose(0, 2, 1, 3)
        return t.reshape(B * num_heads, C, dim_heads)

    qh, kh, vh = apart(q), apart(k), apart(v)
    w = jnp.einsum('bcd,bed->bce', qh, kh) / math.sqrt(dim_heads)
    w = jax.nn.softmax(w, axis=-1)
    o = jnp.einsum('bce,bed->bcd', w, vh)
    o = o.reshape(B, num_heads, C, dim_heads).transpose(0, 2, 1, 3).reshape(B, C, -1)
    o = o @ w_o.T
    att = o.reshape(B, C, H, W)
    return att + x      # residual; dropout p=0.0 is identity; GroupNormalX omitted (TODO above)


# ----------------------------------------------------------------------------- demo
if __name__ == "__main__":
    # Small, module-consistent shapes: num_pixel = H*W = 256, dim_hiddens = 32.
    B, C, H, W = 4, 8, 16, 16
    num_heads, dim_heads = 2, 16
    P = H * W
    Dh = num_heads * dim_heads

    key = jax.random.PRNGKey(0)
    kx, kq, kk, kv, ko = jax.random.split(key, 5)
    x = jax.random.normal(kx, (B, C, H, W), dtype=jnp.float32)
    # PyTorch Linear weight layout (out, in); module default bias=False -> no biases.
    bound_in = 1.0 / math.sqrt(P)
    bound_h = 1.0 / math.sqrt(Dh)
    w_q = jax.random.uniform(kq, (Dh, P), minval=-bound_in, maxval=bound_in, dtype=jnp.float32)
    w_k = jax.random.uniform(kk, (Dh, P), minval=-bound_in, maxval=bound_in, dtype=jnp.float32)
    w_v = jax.random.uniform(kv, (Dh, P), minval=-bound_in, maxval=bound_in, dtype=jnp.float32)
    w_o = jax.random.uniform(ko, (P, Dh), minval=-bound_h, maxval=bound_h, dtype=jnp.float32)

    # Weight packing done once, outside the per-call hot path.
    w_qkv_t, w_o_t = prepare_weights(w_q, w_k, w_v, w_o)

    out = channel_attention_block(x, w_qkv_t, w_o_t, num_heads, dim_heads)
    out = jax.block_until_ready(out)

    ref = _reference(x, w_q, w_k, w_v, w_o, num_heads, dim_heads)
    assert out.shape == (B, C, H, W)
    assert jnp.allclose(out, ref, atol=2e-4, rtol=2e-4)
    print("KERNEL_OK")
</pallas_src>

<mosaic_0001>
module attributes {stable_mosaic.version = 11 : i64} {
  func.func @_attn_kernel(%arg0: i32, %arg1: memref<2x8x256xf32, #tpu.memory_space<vmem>>, %arg2: memref<256x96xf32, #tpu.memory_space<vmem>>, %arg3: memref<32x256xf32, #tpu.memory_space<vmem>>, %arg4: memref<2x8x256xf32, #tpu.memory_space<vmem>>) attributes {dimension_semantics = [#tpu.dimension_semantics<parallel>], iteration_bounds = array<i64: 2>, scalar_prefetch = 0 : i64, scratch_operands = 0 : i64, tpu.core_type = #tpu.core_type<tc>, window_params = [{transform_indices = @transform_0, window_bounds = array<i64: 2, 8, 256>}, {pipeline_mode = #tpu.pipeline_mode<synchronous>, transform_indices = @transform_1, window_bounds = array<i64: 256, 96>}, {pipeline_mode = #tpu.pipeline_mode<synchronous>, transform_indices = @transform_2, window_bounds = array<i64: 32, 256>}, {transform_indices = @transform_3, window_bounds = array<i64: 2, 8, 256>}]} {
    %c0 = arith.constant 0 : index
    %c0_0 = arith.constant 0 : index
    %c0_1 = arith.constant 0 : index
    %0 = vector.load %arg1[%c0, %c0_0, %c0_1] : memref<2x8x256xf32, #tpu.memory_space<vmem>>, vector<2x8x256xf32>
    %1 = vector.shape_cast %0 : vector<2x8x256xf32> to vector<16x256xf32>
    %c0_2 = arith.constant 0 : index
    %c0_3 = arith.constant 0 : index
    %2 = vector.load %arg2[%c0_2, %c0_3] : memref<256x96xf32, #tpu.memory_space<vmem>>, vector<256x96xf32>
    %cst = arith.constant dense<0.000000e+00> : vector<16x96xf32>
    %3 = tpu.matmul %1, %2, %cst {dimension_numbers = #tpu.dot_dimension_numbers<[1], [0], [0], [1], [0, 0, 1, 1], [], []>} : vector<16x256xf32>, vector<256x96xf32>, vector<16x96xf32> -> vector<16x96xf32>
    %4 = vector.extract_strided_slice %3 {offsets = [0, 0], sizes = [16, 32], strides = [1, 1]} : vector<16x96xf32> to vector<16x32xf32>
    %5 = vector.shape_cast %4 : vector<16x32xf32> to vector<2x8x32xf32>
    %6 = vector.extract_strided_slice %3 {offsets = [0, 32], sizes = [16, 32], strides = [1, 1]} : vector<16x96xf32> to vector<16x32xf32>
    %7 = vector.shape_cast %6 : vector<16x32xf32> to vector<2x8x32xf32>
    %8 = vector.extract_strided_slice %3 {offsets = [0, 64], sizes = [16, 32], strides = [1, 1]} : vector<16x96xf32> to vector<16x32xf32>
    %9 = vector.shape_cast %8 : vector<16x32xf32> to vector<2x8x32xf32>
    %10 = vector.extract_strided_slice %5 {offsets = [0, 0, 0], sizes = [2, 8, 16], strides = [1, 1, 1]} : vector<2x8x32xf32> to vector<2x8x16xf32>
    %11 = vector.extract_strided_slice %7 {offsets = [0, 0, 0], sizes = [2, 8, 16], strides = [1, 1, 1]} : vector<2x8x32xf32> to vector<2x8x16xf32>
    %12 = vector.extract_strided_slice %9 {offsets = [0, 0, 0], sizes = [2, 8, 16], strides = [1, 1, 1]} : vector<2x8x32xf32> to vector<2x8x16xf32>
    %cst_4 = arith.constant dense<0.000000e+00> : vector<2x8x8xf32>
    %13 = tpu.matmul %10, %11, %cst_4 {dimension_numbers = #tpu.dot_dimension_numbers<[2], [2], [1], [1], [0, 0, 0, 1, 1, 1], [0], [0]>} : vector<2x8x16xf32>, vector<2x8x16xf32>, vector<2x8x8xf32> -> vector<2x8x8xf32>
    %cst_5 = arith.constant 2.500000e-01 : f32
    %14 = vector.broadcast %cst_5 : f32 to vector<2x8x8xf32>
    %15 = arith.mulf %13, %14 : vector<2x8x8xf32>
    %cst_6 = arith.constant dense<0xFF800000> : vector<2x8xf32>
    %16 = vector.multi_reduction <maximumf>, %15, %cst_6 [2] : vector<2x8x8xf32> to vector<2x8xf32>
    %17 = vector.shape_cast %16 : vector<2x8xf32> to vector<2x8x1xf32>
    %18 = vector.broadcast %17 : vector<2x8x1xf32> to vector<2x8x8xf32>
    %19 = arith.subf %15, %18 : vector<2x8x8xf32>
    %20 = math.exp %19 : vector<2x8x8xf32>
    %cst_7 = arith.constant dense<0.000000e+00> : vector<2x8xf32>
    %21 = vector.multi_reduction <add>, %20, %cst_7 [2] : vector<2x8x8xf32> to vector<2x8xf32>
    %22 = vector.shape_cast %21 : vector<2x8xf32> to vector<2x8x1xf32>
    %23 = tpu.reciprocal %22 {approx = true} : vector<2x8x1xf32> -> vector<2x8x1xf32>
    %24 = arith.mulf %22, %23 : vector<2x8x1xf32>
    %cst_8 = arith.constant 2.000000e+00 : f32
    %25 = vector.broadcast %cst_8 : f32 to vector<2x8x1xf32>
    %26 = arith.subf %25, %24 : vector<2x8x1xf32>
    %27 = arith.mulf %23, %26 : vector<2x8x1xf32>
    %28 = vector.broadcast %27 : vector<2x8x1xf32> to vector<2x8x8xf32>
    %29 = arith.mulf %20, %28 : vector<2x8x8xf32>
    %cst_9 = arith.constant dense<0.000000e+00> : vector<2x8x16xf32>
    %30 = tpu.matmul %29, %12, %cst_9 {dimension_numbers = #tpu.dot_dimension_numbers<[2], [1], [1], [2], [0, 0, 0, 1, 1, 2], [0], [0]>} : vector<2x8x8xf32>, vector<2x8x16xf32>, vector<2x8x16xf32> -> vector<2x8x16xf32>
    %31 = vector.shape_cast %30 : vector<2x8x16xf32> to vector<16x16xf32>
    %c0_10 = arith.constant 0 : index
    %c0_11 = arith.constant 0 : index
    %32 = vector.load %arg3[%c0_10, %c0_11] : memref<32x256xf32, #tpu.memory_space<vmem>>, vector<16x256xf32>
    %cst_12 = arith.constant dense<0.000000e+00> : vector<16x256xf32>
    %33 = tpu.matmul %31, %32, %cst_12 {dimension_numbers = #tpu.dot_dimension_numbers<[1], [0], [0], [1], [0, 0, 1, 1], [], []>} : vector<16x16xf32>, vector<16x256xf32>, vector<16x256xf32> -> vector<16x256xf32>
    %34 = vector.extract_strided_slice %5 {offsets = [0, 0, 16], sizes = [2, 8, 16], strides = [1, 1, 1]} : vector<2x8x32xf32> to vector<2x8x16xf32>
    %35 = vector.extract_strided_slice %7 {offsets = [0, 0, 16], sizes = [2, 8, 16], strides = [1, 1, 1]} : vector<2x8x32xf32> to vector<2x8x16xf32>
    %36 = vector.extract_strided_slice %9 {offsets = [0, 0, 16], sizes = [2, 8, 16], strides = [1, 1, 1]} : vector<2x8x32xf32> to vector<2x8x16xf32>
    %cst_13 = arith.constant dense<0.000000e+00> : vector<2x8x8xf32>
    %37 = tpu.matmul %34, %35, %cst_13 {dimension_numbers = #tpu.dot_dimension_numbers<[2], [2], [1], [1], [0, 0, 0, 1, 1, 1], [0], [0]>} : vector<2x8x16xf32>, vector<2x8x16xf32>, vector<2x8x8xf32> -> vector<2x8x8xf32>
    %cst_14 = arith.constant 2.500000e-01 : f32
    %38 = vector.broadcast %cst_14 : f32 to vector<2x8x8xf32>
    %39 = arith.mulf %37, %38 : vector<2x8x8xf32>
    %cst_15 = arith.constant dense<0xFF800000> : vector<2x8xf32>
    %40 = vector.multi_reduction <maximumf>, %39, %cst_15 [2] : vector<2x8x8xf32> to vector<2x8xf32>
    %41 = vector.shape_cast %40 : vector<2x8xf32> to vector<2x8x1xf32>
    %42 = vector.broadcast %41 : vector<2x8x1xf32> to vector<2x8x8xf32>
    %43 = arith.subf %39, %42 : vector<2x8x8xf32>
    %44 = math.exp %43 : vector<2x8x8xf32>
    %cst_16 = arith.constant dense<0.000000e+00> : vector<2x8xf32>
    %45 = vector.multi_reduction <add>, %44, %cst_16 [2] : vector<2x8x8xf32> to vector<2x8xf32>
    %46 = vector.shape_cast %45 : vector<2x8xf32> to vector<2x8x1xf32>
    %47 = tpu.reciprocal %46 {approx = true} : vector<2x8x1xf32> -> vector<2x8x1xf32>
    %48 = arith.mulf %46, %47 : vector<2x8x1xf32>
    %cst_17 = arith.constant 2.000000e+00 : f32
    %49 = vector.broadcast %cst_17 : f32 to vector<2x8x1xf32>
    %50 = arith.subf %49, %48 : vector<2x8x1xf32>
    %51 = arith.mulf %47, %50 : vector<2x8x1xf32>
    %52 = vector.broadcast %51 : vector<2x8x1xf32> to vector<2x8x8xf32>
    %53 = arith.mulf %44, %52 : vector<2x8x8xf32>
    %cst_18 = arith.constant dense<0.000000e+00> : vector<2x8x16xf32>
    %54 = tpu.matmul %53, %36, %cst_18 {dimension_numbers = #tpu.dot_dimension_numbers<[2], [1], [1], [2], [0, 0, 0, 1, 1, 2], [0], [0]>} : vector<2x8x8xf32>, vector<2x8x16xf32>, vector<2x8x16xf32> -> vector<2x8x16xf32>
    %55 = vector.shape_cast %54 : vector<2x8x16xf32> to vector<16x16xf32>
    %c16 = arith.constant 16 : index
    %c0_19 = arith.constant 0 : index
    %56 = vector.load %arg3[%c16, %c0_19] : memref<32x256xf32, #tpu.memory_space<vmem>>, vector<16x256xf32>
    %cst_20 = arith.constant dense<0.000000e+00> : vector<16x256xf32>
    %57 = tpu.matmul %55, %56, %cst_20 {dimension_numbers = #tpu.dot_dimension_numbers<[1], [0], [0], [1], [0, 0, 1, 1], [], []>} : vector<16x16xf32>, vector<16x256xf32>, vector<16x256xf32> -> vector<16x256xf32>
    %58 = arith.addf %33, %57 : vector<16x256xf32>
    %59 = vector.shape_cast %58 : vector<16x256xf32> to vector<2x8x256xf32>
    %60 = arith.addf %59, %0 : vector<2x8x256xf32>
    %c0_21 = arith.constant 0 : index
    %c0_22 = arith.constant 0 : index
    %c0_23 = arith.constant 0 : index
    %61 = vector.load %arg4[%c0_21, %c0_22, %c0_23] : memref<2x8x256xf32, #tpu.memory_space<vmem>>, vector<2x8x256xf32>
    tpu.vector_store %arg4[%c0_21, %c0_22, %c0_23], %60 {strides = array<i32>} : memref<2x8x256xf32, #tpu.memory_space<vmem>>, vector<2x8x256xf32>,
    return
  }
  func.func @transform_0(%arg0: i32) -> (i32, i32, i32) {
    %c0_i32 = arith.constant 0 : i32
    %c0_i32_0 = arith.constant 0 : i32
    %c0_i32_1 = arith.constant 0 : i32
    return %arg0, %c0_i32, %c0_i32_0 : i32, i32, i32
  }
  func.func @transform_1(%arg0: i32) -> (i32, i32) {
    %c0_i32 = arith.constant 0 : i32
    %c0_i32_0 = arith.constant 0 : i32
    %c0_i32_1 = arith.constant 0 : i32
    return %c0_i32, %c0_i32_0 : i32, i32
  }
  func.func @transform_2(%arg0: i32) -> (i32, i32) {
    %c0_i32 = arith.constant 0 : i32
    %c0_i32_0 = arith.constant 0 : i32
    %c0_i32_1 = arith.constant 0 : i32
    return %c0_i32, %c0_i32_0 : i32, i32
  }
  func.func @transform_3(%arg0: i32) -> (i32, i32, i32) {
    %c0_i32 = arith.constant 0 : i32
    %c0_i32_0 = arith.constant 0 : i32
    %c0_i32_1 = arith.constant 0 : i32
    return %arg0, %c0_i32, %c0_i32_0 : i32, i32, i32
  }
}

</mosaic_0001>

<llo_original>
// kernel: tpu_custom_call.1
$region0: #{tpu_custom_call.1}
  #allocation0 [shape = 'u32[]', space=smem, size = 0x4, offset = 0x4, fixed_abs, tag = 'smem constant byte address 0x4 - core index']
  #allocation1 [shape = 'u32[144,128]{1,0:T(1,128)}', space=vmem, size = 0x12000, scoped, tag = 'internal scratch']
  %s0 = inlined_call_operand.vmem [shape: f32[4,8,256], index: 0, kind: input, shape index: {}]
  %s1 = inlined_call_operand.vmem [shape: f32[256,96], index: 1, kind: input, shape index: {}]
  %s2 = inlined_call_operand.vmem [shape: f32[32,256], index: 2, kind: input, shape index: {}]
  %s3 = inlined_call_operand.hbm [shape: f32[4,8,256], index: 3, kind: output, shape index: {}]
  %s4 = sld [smem:[#allocation0]]
  $region45: #{tpu_custom_call.1} parent=0
    _
  %s6 = ssub.s32 1, %s4
  %s7 = scalar_select 0, %s6, %s4
  $region1: #{tpu_custom_call.1} parent=0
    #allocation2 [shape = 'u8[32768]{0}', space=vmem, size = 0x8000, scoped, tag = 'output window, operand 0']
    #allocation3 [shape = 's32[2]{0}', space=sflag, size = 0x8, scoped, tag = 'scoped memory for tpu_custom_call.1']
    %8 = vsyncpa [#allocation3], 0
    %s9 = scalar_lea.sflag [#allocation3], 1
    %10 = vsyncpa %s9, 0
    loop: start=0, step=1, limit=4
    $region2: #{tpu_custom_call.1} parent=1 // loop_pre_header
      _
    $region3: #{tpu_custom_call.1} parent=1 // loop_header
      %s12 = sphi 0, %s16
      %p13 = scmp.ge.s32.totalorder %s12, 4
      %s22 = sphi 0, %s24
      %s25 = sphi 0, %s22
      %s26 = sphi 0, %s25
      %s42 = sphi 0, %s26
      %s46 = sphi 0, %s46
      %s48 = sphi 0, %s46
      %s49 = sphi 0, %s48
      %s63 = sphi 0, %s49
      %s67 = sphi 0, %s67
      %s69 = sphi 0, %s67
      %s70 = sphi 0, %s69
      %s84 = sphi 0, %s70
      %s90 = sphi 0, %s92
      %s93 = sphi 0, %s90
      %s94 = sphi 0, %s93
      %s110 = sphi 0, %s94
    $region4: #{tpu_custom_call.1} parent=1 // loop_header_branch
      %15 = sbr.rel (%p13) target = $region8
    $region5: #{tpu_custom_call.1} parent=1 // loop_body
      %s17 = ssub.s32 %s12, 1
      %s18 = ssub.s32 %s12, 2
      %s19 = sadd.s32 %s12, 1
      %s20 = ssub.s32 %s12, %s19
      %p21 = scmp.eq.s32.totalorder %s20, 0
      %s23 = sadd.s32 %s22, 1
      %s24 = scalar_select %p21, %s22, %s23
      %p27 = pneg %p21
      %p28 = scmp.eq.s32.totalorder %s12, 1
      %p29 = por %p27, %p28
      %p30 = scmp.ne.s32.totalorder %s22, %s25
      %p31 = scmp.eq.s32.totalorder %s12, 0
      %p32 = por %p30, %p31
      %p33 = scmp.ne.s32.totalorder %s22, %s25
      %p34 = scmp.eq.s32.totalorder %s17, 1
      %p35 = por %p33, %p34
      %p36 = scmp.ne.s32.totalorder %s25, %s26
      %p37 = scmp.eq.s32.totalorder %s17, 0
      %p38 = por %p36, %p37
      %p39 = scmp.ne.s32.totalorder %s25, %s26
      %p40 = scmp.eq.s32.totalorder %s18, 1
      %p41 = por %p39, %p40
      %p43 = scmp.ne.s32.totalorder %s26, %s42
      %p44 = scmp.eq.s32.totalorder %s18, 0
      %p45 = por %p43, %p44
      %s47 = sadd.s32 %s46, 1
      %p50 = scmp.eq.s32.totalorder %s12, 1
      %p51 = scmp.ne.s32.totalorder %s46, %s48
      %p52 = scmp.eq.s32.totalorder %s12, 0
      %p53 = por %p51, %p52
      %p54 = scmp.ne.s32.totalorder %s46, %s48
      %p55 = scmp.eq.s32.totalorder %s17, 1
      %p56 = por %p54, %p55
      %p57 = scmp.ne.s32.totalorder %s48, %s49
      %p58 = scmp.eq.s32.totalorder %s17, 0
      %p59 = por %p57, %p58
      %p60 = scmp.ne.s32.totalorder %s48, %s49
      %p61 = scmp.eq.s32.totalorder %s18, 1
      %p62 = por %p60, %p61
      %p64 = scmp.ne.s32.totalorder %s49, %s63
      %p65 = scmp.eq.s32.totalorder %s18, 0
      %p66 = por %p64, %p65
      %s68 = sadd.s32 %s67, 1
      %p71 = scmp.eq.s32.totalorder %s12, 1
      %p72 = scmp.ne.s32.totalorder %s67, %s69
      %p73 = scmp.eq.s32.totalorder %s12, 0
      %p74 = por %p72, %p73
      %p75 = scmp.ne.s32.totalorder %s67, %s69
      %p76 = scmp.eq.s32.totalorder %s17, 1
      %p77 = por %p75, %p76
      %p78 = scmp.ne.s32.totalorder %s69, %s70
      %p79 = scmp.eq.s32.totalorder %s17, 0
      %p80 = por %p78, %p79
      %p81 = scmp.ne.s32.totalorder %s69, %s70
      %p82 = scmp.eq.s32.totalorder %s18, 1
      %p83 = por %p81, %p82
      %p85 = scmp.ne.s32.totalorder %s70, %s84
      %p86 = scmp.eq.s32.totalorder %s18, 0
      %p87 = por %p85, %p86
      %s88 = ssub.s32 %s12, %s19
      %p89 = scmp.eq.s32.totalorder %s88, 0
      %s91 = sadd.s32 %s90, 1
      %s92 = scalar_select %p89, %s90, %s91
      %p95 = pneg %p89
      %p96 = scmp.eq.s32.totalorder %s12, 1
      %p97 = por %p95, %p96
      %p98 = scmp.ne.s32.totalorder %s90, %s93
      %p99 = scmp.eq.s32.totalorder %s12, 0
      %p100 = por %p98, %p99
      %p101 = scmp.ne.s32.totalorder %s90, %s93
      %p102 = scmp.eq.s32.totalorder %s17, 1
      %p103 = por %p101, %p102
      %p104 = scmp.ne.s32.totalorder %s93, %s94
      %p105 = scmp.eq.s32.totalorder %s17, 0
      %p106 = por %p104, %p105
      %p107 = scmp.ne.s32.totalorder %s93, %s94
      %p108 = scmp.eq.s32.totalorder %s18, 1
      %p109 = por %p107, %p108
      %p111 = scmp.ne.s32.totalorder %s94, %s110
      %p112 = scmp.eq.s32.totalorder %s18, 0
      %p113 = por %p111, %p112
      %p114 = scmp.le.s32.totalorder 1, %s12
      %p115 = scmp.lt.s32.totalorder %s12, 3
      %p116 = pnand %p114, %p115
      %p117 = pneg %p116
      // Predicated region
      $region9: #{tpu_custom_call.1} parent=5 // pred_check
        _
      $region10: #{tpu_custom_call.1} parent=5 // pred_check_branch
        %119 = sbr.rel (%p116) target = $region12
      $region11: #{tpu_custom_call.1} parent=5 // pred_region
        %s120 = ssub.s32 %s12, 1
        // Predicated region
        $region13: #{tpu_custom_call.1} parent=11 // pred_check
          %p121 = pneg %p59
        $region14: #{tpu_custom_call.1} parent=11 // pred_check_branch
          %123 = sbr.rel (%p121) target = $region16
        $region15: #{tpu_custom_call.1} parent=11 // pred_region
          _
        $region16: #{tpu_custom_call.1} parent=11 // pred_fallthru
          _
        // Predicated region
        $region17: #{tpu_custom_call.1} parent=11 // pred_check
          %p124 = pneg %p80
        $region18: #{tpu_custom_call.1} parent=11 // pred_check_branch
          %126 = sbr.rel (%p124) target = $region20
        $region19: #{tpu_custom_call.1} parent=11 // pred_region
          _
        $region20: #{tpu_custom_call.1} parent=11 // pred_fallthru
          _
      $region12: #{tpu_custom_call.1} parent=5 // pred_fallthru
        _
      %p127 = scmp.lt.s32.totalorder %s12, 2
      // Predicated region
      $region21: #{tpu_custom_call.1} parent=5 // pred_check
        %p128 = pneg %p127
      $region22: #{tpu_custom_call.1} parent=5 // pred_check_branch
        %130 = sbr.rel (%p128) target = $region24
      $region23: #{tpu_custom_call.1} parent=5 // pred_region
        // Predicated region
        $region25: #{tpu_custom_call.1} parent=23 // pred_check
          %p131 = pneg %p32
        $region26: #{tpu_custom_call.1} parent=23 // pred_check_branch
          %133 = sbr.rel (%p131) target = $region28
        $region27: #{tpu_custom_call.1} parent=23 // pred_region
          %s134 = smul.u32 2, %s12
          %p135 = scmp.lt.s32.totalorder %s134, 3
          %s136 = scalar_select %p135, %s134, 3
          %s137 = smul.addr %s136, 2
          %s138 = smul.addr %s137, 8
          %s139 = scalar_lea.vmem %s0, %s138
          %s140 = smul.u32 2, %s12
        $region28: #{tpu_custom_call.1} parent=23 // pred_fallthru
          _
      $region24: #{tpu_custom_call.1} parent=5 // pred_fallthru
        _
      %p141 = scmp.le.s32.totalorder 1, %s12
      %p142 = scmp.lt.s32.totalorder %s12, 3
      %p143 = pnand %p141, %p142
      %p144 = pneg %p143
      // Predicated region
      $region29: #{tpu_custom_call.1} parent=5 // pred_check
        _
      $region30: #{tpu_custom_call.1} parent=5 // pred_check_branch
        %146 = sbr.rel (%p143) target = $region32
      $region31: #{tpu_custom_call.1} parent=5 // pred_region
        %s147 = ssub.s32 %s12, 1
        %s148 = smul.u32 2, %s17
        %p149 = scmp.lt.s32.totalorder %s148, 3
        %s150 = scalar_select %p149, %s148, 3
        %s151 = smul.addr %s150, 2
        %s152 = smul.addr %s151, 8
        %s153 = scalar_lea.vmem %s0, %s152
        %p154 = pneg %p38
        %p155 = pneg %p35
        %p156 = pneg %p59
        %p157 = pneg %p56
        %p158 = pneg %p80
        %p159 = pneg %p77
        %p160 = pneg %p106
        %p161 = pneg %p103
        %s162 = sand.u32 %s93, 1
        %s163 = scalar_lea.sflag [#allocation3], %s162
        %s164 = sand.u32 %s93, 1
        %s165 = smul.addr %s164, 32
        %s166 = scalar_lea.vmem [#allocation2], %s165
        %s167 = smul.u32 2, %s17
        %p168 = scmp.lt.s32.totalorder %s167, 3
        %s169 = scalar_select %p168, %s167, 3
        %s170 = smul.addr %s169, 2
        %s171 = smul.addr %s170, 8
        %s172 = scalar_lea.vmem %s0, %s171
        %s173 = smul.u32 2, %s17
        %s174 = smul.u32 2, %s17
        %v175 = vld [vmem:[%s172] sm:$0xff]
        %v176 = vld [vmem:[%s172 + $0x8] sm:$0xff]
        %v177 = vld [vmem:[%s172 + $0x10] sm:$0xff]
        %v178 = vld [vmem:[%s172 + $0x18] sm:$0xff]
        %v179 = vld [vmem:[%s1] sm:$0xff]
        %v180 = vld [vmem:[%s1 + $0x8] sm:$0xff]
        %v181 = vld [vmem:[%s1 + $0x10] sm:$0xff]
        %v182 = vld [vmem:[%s1 + $0x18] sm:$0xff]
        %v183 = vld [vmem:[%s1 + $0x20] sm:$0xff]
        %v184 = vld [vmem:[%s1 + $0x28] sm:$0xff]
        %v185 = vld [vmem:[%s1 + $0x30] sm:$0xff]
        %v186 = vld [vmem:[%s1 + $0x38] sm:$0xff]
        %v187 = vld [vmem:[%s1 + $0x40] sm:$0xff]
        %v188 = vld [vmem:[%s1 + $0x48] sm:$0xff]
        %v189 = vld [vmem:[%s1 + $0x50] sm:$0xff]
        %v190 = vld [vmem:[%s1 + $0x58] sm:$0xff]
        %v191 = vld [vmem:[%s1 + $0x60] sm:$0xff]
        %v192 = vld [vmem:[%s1 + $0x68] sm:$0xff]
        %v193 = vld [vmem:[%s1 + $0x70] sm:$0xff]
        %v194 = vld [vmem:[%s1 + $0x78] sm:$0xff]
        %v195 = vld [vmem:[%s1 + $0x80] sm:$0xff]
        %v196 = vld [vmem:[%s1 + $0x88] sm:$0xff]
        %v197 = vld [vmem:[%s1 + $0x90] sm:$0xff]
        %v198 = vld [vmem:[%s1 + $0x98] sm:$0xff]
        %v199 = vld [vmem:[%s1 + $0xa0] sm:$0xff]
        %v200 = vld [vmem:[%s1 + $0xa8] sm:$0xff]
        %v201 = vld [vmem:[%s1 + $0xb0] sm:$0xff]
        %v202 = vld [vmem:[%s1 + $0xb8] sm:$0xff]
        %v203 = vld [vmem:[%s1 + $0xc0] sm:$0xff]
        %v204 = vld [vmem:[%s1 + $0xc8] sm:$0xff]
        %v205 = vld [vmem:[%s1 + $0xd0] sm:$0xff]
        %v206 = vld [vmem:[%s1 + $0xd8] sm:$0xff]
        %v207 = vld [vmem:[%s1 + $0xe0] sm:$0xff]
        %v208 = vld [vmem:[%s1 + $0xe8] sm:$0xff]
        %v209 = vld [vmem:[%s1 + $0xf0] sm:$0xff]
        %v210 = vld [vmem:[%s1 + $0xf8] sm:$0xff]
        %211 = vmatprep.subr.mxu0 0.0
        %212 = vmatpush1.msra.mxu0 %v179
        %213 = vmatprep.subr.mxu0 0.0
        %214 = vmatpush1.msra.mxu0 %v180
        %215 = vmatprep.subr.mxu0 0.0
        %216 = vmatpush1.msra.mxu0 %v181
        %217 = vmatprep.subr.mxu0 0.0
        %218 = vmatpush1.msra.mxu0 %v182
        %219 = vmatprep.subr.mxu0 0.0
        %220 = vmatpush1.msra.mxu0 %v183
        %221 = vmatprep.subr.mxu0 0.0
        %222 = vmatpush1.msra.mxu0 %v184
        %223 = vmatprep.subr.mxu0 0.0
        %224 = vmatpush1.msra.mxu0 %v185
        %225 = vmatprep.subr.mxu0 0.0
        %226 = vmatpush1.msra.mxu0 %v186
        %227 = vmatprep.subr.mxu0 0.0
        %228 = vmatpush1.msra.mxu0 %v187
        %229 = vmatprep.subr.mxu0 0.0
        %230 = vmatpush1.msra.mxu0 %v188
        %231 = vmatprep.subr.mxu0 0.0
        %232 = vmatpush1.msra.mxu0 %v189
        %233 = vmatprep.subr.mxu0 0.0
        %234 = vmatpush1.msra.mxu0 %v190
        %235 = vmatprep.subr.mxu0 0.0
        %236 = vmatpush1.msra.mxu0 %v191
        %237 = vmatprep.subr.mxu0 0.0
        %238 = vmatpush1.msra.mxu0 %v192
        %239 = vmatprep.subr.mxu0 0.0
        %240 = vmatpush1.msra.mxu0 %v193
        %241 = vmatprep.subr.mxu0 0.0
        %242 = vmatpush1.msra.mxu0 %v194
        %243 = vmatprep.subr.mxu0 0.0
        %244 = vmatpush1.msra.mxu0 %v195
        %245 = vmatprep.subr.mxu0 0.0
        %246 = vmatpush1.msra.mxu0 %v196
        %247 = vmatprep.subr.mxu0 0.0
        %248 = vmatpush1.msra.mxu0 %v197
        %249 = vmatprep.subr.mxu0 0.0
        %250 = vmatpush1.msra.mxu0 %v198
        %251 = vmatprep.subr.mxu0 0.0
        %252 = vmatpush1.msra.mxu0 %v199
        %253 = vmatprep.subr.mxu0 0.0
        %254 = vmatpush1.msra.mxu0 %v200
        %255 = vmatprep.subr.mxu0 0.0
        %256 = vmatpush1.msra.mxu0 %v201
        %257 = vmatprep.subr.mxu0 0.0
        %258 = vmatpush1.msra.mxu0 %v202
        %259 = vmatprep.subr.mxu0 0.0
        %260 = vmatpush1.msra.mxu0 %v203
        %261 = vmatprep.subr.mxu0 0.0
        %262 = vmatpush1.msra.mxu0 %v204
        %263 = vmatprep.subr.mxu0 0.0
        %264 = vmatpush1.msra.mxu0 %v205
        %265 = vmatprep.subr.mxu0 0.0
        %266 = vmatpush1.msra.mxu0 %v206
        %267 = vmatprep.subr.mxu0 0.0
        %268 = vmatpush1.msra.mxu0 %v207
        %269 = vmatprep.subr.mxu0 0.0
        %270 = vmatpush1.msra.mxu0 %v208
        %271 = vmatprep.subr.mxu0 0.0
        %272 = vmatpush1.msra.mxu0 %v209
        %273 = vmatprep.subr.mxu0 0.0
        %274 = vmatpush1.msra.mxu0 %v210
        %275 = vmatprep.mubr.f32.mxu0 %v176
        %276 = vmatmul.mubr.f32.gmra.mrb[0].mxu0 %v175
        %v277 = vpop.f32.mrb[0].mxu0
        %v278 = vadd.f32 0.0, %v277
        %v279 = vpop.f32.mrb[0].mxu0
        %280 = vmatprep.mubr.f32.mxu0 %v178
        %281 = vmatmul.mubr.f32.gmra.mrb[0].mxu0 %v177
        %v282 = vpop.f32.mrb[0].mxu0
        %v283 = vadd.f32 0.0, %v282
        %v284 = vpop.f32.mrb[0].mxu0
        %285 = vdwg.mxu0
        %287 = vrot.lane.b32.xlu0 %v278, 96
        %v288 = vpop.permute.xlu0 %287
        %vm289 = vcmask 130048
        %v290 = vsel %vm289, %v278, 0
        %v292 = vsel %vm289, %v288, 0
        %294 = vmatprep.subr.mxu0 0.0
        %295 = vmatpush1.xpose.msra.mxu0 %v292
        %296 = vmatprep.subr.mxu0 0.0
        %297 = vmatpush1.xpose.msra.mxu0 0.0
        %298 = vmatprep.subr.mxu0 0.0
        %299 = vmatpush1.xpose.msra.mxu0 0.0
        %300 = vmatprep.subr.mxu0 0.0
        %301 = vmatpush1.xpose.msra.mxu0 0.0
        %302 = vmatprep.subr.mxu0 0.0
        %303 = vmatpush1.xpose.msra.mxu0 0.0
        %304 = vmatprep.subr.mxu0 0.0
        %305 = vmatpush1.xpose.msra.mxu0 0.0
        %306 = vmatprep.subr.mxu0 0.0
        %307 = vmatpush1.xpose.msra.mxu0 0.0
        %308 = vmatprep.subr.mxu0 0.0
        %309 = vmatpush1.xpose.msra.mxu0 0.0
        %310 = vmatprep.subr.mxu0 0.0
        %311 = vmatpush1.xpose.msra.mxu0 0.0
        %312 = vmatprep.subr.mxu0 0.0
        %313 = vmatpush1.xpose.msra.mxu0 0.0
        %314 = vmatprep.subr.mxu0 0.0
        %315 = vmatpush1.xpose.msra.mxu0 0.0
        %316 = vmatprep.subr.mxu0 0.0
        %317 = vmatpush1.xpose.msra.mxu0 0.0
        %318 = vmatprep.subr.mxu0 0.0
        %319 = vmatpush1.xpose.msra.mxu0 0.0
        %320 = vmatprep.subr.mxu0 0.0
        %321 = vmatpush1.xpose.msra.mxu0 0.0
        %322 = vmatprep.subr.mxu0 0.0
        %323 = vmatpush1.xpose.msra.mxu0 0.0
        %324 = vmatprep.subr.mxu0 0.0
        %325 = vmatpush1.xpose.msra.mxu0 0.0
        %326 = vmatprep.subr.mxu0 0.0
        %327 = vmatpush1.xpose.msra.mxu0 0.0
        %328 = vmatprep.subr.mxu0 0.0
        %329 = vmatpush1.xpose.msra.mxu0 0.0
        %330 = vmatprep.subr.mxu0 0.0
        %331 = vmatpush1.xpose.msra.mxu0 0.0
        %332 = vmatprep.subr.mxu0 0.0
        %333 = vmatpush1.xpose.msra.mxu0 0.0
        %334 = vmatprep.subr.mxu0 0.0
        %335 = vmatpush1.xpose.msra.mxu0 0.0
        %336 = vmatprep.subr.mxu0 0.0
        %337 = vmatpush1.xpose.msra.mxu0 0.0
        %338 = vmatprep.subr.mxu0 0.0
        %339 = vmatpush1.xpose.msra.mxu0 0.0
        %340 = vmatprep.subr.mxu0 0.0
        %341 = vmatpush1.xpose.msra.mxu0 0.0
        %342 = vmatprep.subr.mxu0 0.0
        %343 = vmatpush1.xpose.msra.mxu0 0.0
        %344 = vmatprep.subr.mxu0 0.0
        %345 = vmatpush1.xpose.msra.mxu0 0.0
        %346 = vmatprep.subr.mxu0 0.0
        %347 = vmatpush1.xpose.msra.mxu0 0.0
        %348 = vmatprep.subr.mxu0 0.0
        %349 = vmatpush1.xpose.msra.mxu0 0.0
        %350 = vmatprep.subr.mxu0 0.0
        %351 = vmatpush1.xpose.msra.mxu0 0.0
        %352 = vmatprep.subr.mxu0 0.0
        %353 = vmatpush1.xpose.msra.mxu0 0.0
        %354 = vmatprep.subr.mxu0 0.0
        %355 = vmatpush1.xpose.msra.mxu0 0.0
        %356 = vmatprep.subr.mxu0 0.0
        %357 = vmatpush1.xpose.msra.mxu0 0.0
        %358 = vmatprep.mubr.f32.mxu0 0.0
        %359 = vmatmul.mubr.f32.gmra.mrb[0].mxu0 %v290
        %v360 = vpop.f32.mrb[0].mxu0
        %v361 = vadd.f32 0.0, %v360
        %v362 = vpop.f32.mrb[0].mxu0
        %363 = vdwg.mxu0
        %365 = vrot.lane.b32.xlu0 %v283, 96
        %v366 = vpop.permute.xlu0 %365
        %v367 = vsel %vm289, %v283, 0
        %v369 = vsel %vm289, %v366, 0
        %371 = vmatprep.subr.mxu0 0.0
        %372 = vmatpush1.xpose.msra.mxu0 %v369
        %373 = vmatprep.subr.mxu0 0.0
        %374 = vmatpush1.xpose.msra.mxu0 0.0
        %375 = vmatprep.subr.mxu0 0.0
        %376 = vmatpush1.xpose.msra.mxu0 0.0
        %377 = vmatprep.subr.mxu0 0.0
        %378 = vmatpush1.xpose.msra.mxu0 0.0
        %379 = vmatprep.subr.mxu0 0.0
        %380 = vmatpush1.xpose.msra.mxu0 0.0
        %381 = vmatprep.subr.mxu0 0.0
        %382 = vmatpush1.xpose.msra.mxu0 0.0
        %383 = vmatprep.subr.mxu0 0.0
        %384 = vmatpush1.xpose.msra.mxu0 0.0
        %385 = vmatprep.subr.mxu0 0.0
        %386 = vmatpush1.xpose.msra.mxu0 0.0
        %387 = vmatprep.subr.mxu0 0.0
        %388 = vmatpush1.xpose.msra.mxu0 0.0
        %389 = vmatprep.subr.mxu0 0.0
        %390 = vmatpush1.xpose.msra.mxu0 0.0
        %391 = vmatprep.subr.mxu0 0.0
        %392 = vmatpush1.xpose.msra.mxu0 0.0
        %393 = vmatprep.subr.mxu0 0.0
        %394 = vmatpush1.xpose.msra.mxu0 0.0
        %395 = vmatprep.subr.mxu0 0.0
        %396 = vmatpush1.xpose.msra.mxu0 0.0
        %397 = vmatprep.subr.mxu0 0.0
        %398 = vmatpush1.xpose.msra.mxu0 0.0
        %399 = vmatprep.subr.mxu0 0.0
        %400 = vmatpush1.xpose.msra.mxu0 0.0
        %401 = vmatprep.subr.mxu0 0.0
        %402 = vmatpush1.xpose.msra.mxu0 0.0
        %403 = vmatprep.subr.mxu0 0.0
        %404 = vmatpush1.xpose.msra.mxu0 0.0
        %405 = vmatprep.subr.mxu0 0.0
        %406 = vmatpush1.xpose.msra.mxu0 0.0
        %407 = vmatprep.subr.mxu0 0.0
        %408 = vmatpush1.xpose.msra.mxu0 0.0
        %409 = vmatprep.subr.mxu0 0.0
        %410 = vmatpush1.xpose.msra.mxu0 0.0
        %411 = vmatprep.subr.mxu0 0.0
        %412 = vmatpush1.xpose.msra.mxu0 0.0
        %413 = vmatprep.subr.mxu0 0.0
        %414 = vmatpush1.xpose.msra.mxu0 0.0
        %415 = vmatprep.subr.mxu0 0.0
        %416 = vmatpush1.xpose.msra.mxu0 0.0
        %417 = vmatprep.subr.mxu0 0.0
        %418 = vmatpush1.xpose.msra.mxu0 0.0
        %419 = vmatprep.subr.mxu0 0.0
        %420 = vmatpush1.xpose.msra.mxu0 0.0
        %421 = vmatprep.subr.mxu0 0.0
        %422 = vmatpush1.xpose.msra.mxu0 0.0
        %423 = vmatprep.subr.mxu0 0.0
        %424 = vmatpush1.xpose.msra.mxu0 0.0
        %425 = vmatprep.subr.mxu0 0.0
        %426 = vmatpush1.xpose.msra.mxu0 0.0
        %427 = vmatprep.subr.mxu0 0.0
        %428 = vmatpush1.xpose.msra.mxu0 0.0
        %429 = vmatprep.subr.mxu0 0.0
        %430 = vmatpush1.xpose.msra.mxu0 0.0
        %431 = vmatprep.subr.mxu0 0.0
        %432 = vmatpush1.xpose.msra.mxu0 0.0
        %433 = vmatprep.subr.mxu0 0.0
        %434 = vmatpush1.xpose.msra.mxu0 0.0
        %435 = vmatprep.mubr.f32.mxu0 0.0
        %436 = vmatmul.mubr.f32.gmra.mrb[0].mxu0 %v367
        %v437 = vpop.f32.mrb[0].mxu0
        %v438 = vadd.f32 0.0, %v437
        %v439 = vpop.f32.mrb[0].mxu0
        %440 = vdwg.mxu0
        %v441 = vmul.f32 %v361, 0.25
        %v442 = vmul.f32 %v438, 0.25
        %vm443 = vcmask 64512
        %v444 = vsel %vm443, %v441, -inf
        %445 = vmax.xlane.f32.xlu0 %v444
        %v446 = vpop.xlane.xlu0 %445
        %v447 = vsel %vm443, %v442, -inf
        %448 = vmax.xlane.f32.xlu0 %v447
        %v449 = vpop.xlane.xlu0 %448
        %v450 = vsub.f32 %v441, %v446
        %v451 = vsub.f32 %v442, %v449
        %v452 = vmul.f32 %v450, 1.442695
        %v453 = vpow.pop %v452
        %v454 = vmul.f32 %v451, 1.442695
        %v455 = vpow.pop %v454
        %v456 = vsel %vm443, %v453, 0.0
        %457 = vadd.xlane.f32.xlu0 %v456
        %v458 = vpop.xlane.xlu0 %457
        %v459 = vsel %vm443, %v455, 0.0
        %460 = vadd.xlane.f32.xlu0 %v459
        %v461 = vpop.xlane.xlu0 %460
        %v462 = vrcp.pop %v458
        %v463 = vrcp.pop %v461
        %v464 = vmul.f32 %v458, %v462
        %v465 = vmul.f32 %v461, %v463
        %v466 = vsub.f32 2.0, %v464
        %v467 = vsub.f32 2.0, %v465
        %v468 = vmul.f32 %v462, %v466
        %v469 = vmul.f32 %v463, %v467
        %v470 = vmul.f32 %v453, %v468
        %v471 = vmul.f32 %v455, %v469
        %472 = vrot.lane.b32.xlu0 %v278, 64
        %v473 = vpop.permute.xlu0 %472
        %v476 = vsel %vm443, %v470, 0
        %478 = vmatprep.subr.mxu0 0.0
        %479 = vmatpush1.msra.mxu0 %v473
        %480 = vmatprep.subr.mxu0 0.0
        %481 = vmatpush1.msra.mxu0 0.0
        %482 = vmatprep.subr.mxu0 0.0
        %483 = vmatpush1.msra.mxu0 0.0
        %484 = vmatprep.subr.mxu0 0.0
        %485 = vmatpush1.msra.mxu0 0.0
        %486 = vmatprep.subr.mxu0 0.0
        %487 = vmatpush1.msra.mxu0 0.0
        %488 = vmatprep.subr.mxu0 0.0
        %489 = vmatpush1.msra.mxu0 0.0
        %490 = vmatprep.subr.mxu0 0.0
        %491 = vmatpush1.msra.mxu0 0.0
        %492 = vmatprep.subr.mxu0 0.0
        %493 = vmatpush1.msra.mxu0 0.0
        %494 = vmatprep.subr.mxu0 0.0
        %495 = vmatpush1.msra.mxu0 0.0
        %496 = vmatprep.subr.mxu0 0.0
        %497 = vmatpush1.msra.mxu0 0.0
        %498 = vmatprep.subr.mxu0 0.0
        %499 = vmatpush1.msra.mxu0 0.0
        %500 = vmatprep.subr.mxu0 0.0
        %501 = vmatpush1.msra.mxu0 0.0
        %502 = vmatprep.subr.mxu0 0.0
        %503 = vmatpush1.msra.mxu0 0.0
        %504 = vmatprep.subr.mxu0 0.0
        %505 = vmatpush1.msra.mxu0 0.0
        %506 = vmatprep.subr.mxu0 0.0
        %507 = vmatpush1.msra.mxu0 0.0
        %508 = vmatprep.subr.mxu0 0.0
        %509 = vmatpush1.msra.mxu0 0.0
        %510 = vmatprep.subr.mxu0 0.0
        %511 = vmatpush1.msra.mxu0 0.0
        %512 = vmatprep.subr.mxu0 0.0
        %513 = vmatpush1.msra.mxu0 0.0
        %514 = vmatprep.subr.mxu0 0.0
        %515 = vmatpush1.msra.mxu0 0.0
        %516 = vmatprep.subr.mxu0 0.0
        %517 = vmatpush1.msra.mxu0 0.0
        %518 = vmatprep.subr.mxu0 0.0
        %519 = vmatpush1.msra.mxu0 0.0
        %520 = vmatprep.subr.mxu0 0.0
        %521 = vmatpush1.msra.mxu0 0.0
        %522 = vmatprep.subr.mxu0 0.0
        %523 = vmatpush1.msra.mxu0 0.0
        %524 = vmatprep.subr.mxu0 0.0
        %525 = vmatpush1.msra.mxu0 0.0
        %526 = vmatprep.subr.mxu0 0.0
        %527 = vmatpush1.msra.mxu0 0.0
        %528 = vmatprep.subr.mxu0 0.0
        %529 = vmatpush1.msra.mxu0 0.0
        %530 = vmatprep.subr.mxu0 0.0
        %531 = vmatpush1.msra.mxu0 0.0
        %532 = vmatprep.subr.mxu0 0.0
        %533 = vmatpush1.msra.mxu0 0.0
        %534 = vmatprep.subr.mxu0 0.0
        %535 = vmatpush1.msra.mxu0 0.0
        %536 = vmatprep.subr.mxu0 0.0
        %537 = vmatpush1.msra.mxu0 0.0
        %538 = vmatprep.subr.mxu0 0.0
        %539 = vmatpush1.msra.mxu0 0.0
        %540 = vmatprep.subr.mxu0 0.0
        %541 = vmatpush1.msra.mxu0 0.0
        %542 = vmatprep.mubr.f32.mxu0 0.0
        %543 = vmatmul.mubr.f32.gmra.mrb[0].mxu0 %v476
        %v544 = vpop.f32.mrb[0].mxu0
        %v545 = vadd.f32 0.0, %v544
        %v546 = vpop.f32.mrb[0].mxu0
        %547 = vdwg.mxu0
        %548 = vrot.lane.b32.xlu0 %v283, 64
        %v549 = vpop.permute.xlu0 %548
        %v552 = vsel %vm443, %v471, 0
        %554 = vmatprep.subr.mxu0 0.0
        %555 = vmatpush1.msra.mxu0 %v549
        %556 = vmatprep.subr.mxu0 0.0
        %557 = vmatpush1.msra.mxu0 0.0
        %558 = vmatprep.subr.mxu0 0.0
        %559 = vmatpush1.msra.mxu0 0.0
        %560 = vmatprep.subr.mxu0 0.0
        %561 = vmatpush1.msra.mxu0 0.0
        %562 = vmatprep.subr.mxu0 0.0
        %563 = vmatpush1.msra.mxu0 0.0
        %564 = vmatprep.subr.mxu0 0.0
        %565 = vmatpush1.msra.mxu0 0.0
        %566 = vmatprep.subr.mxu0 0.0
        %567 = vmatpush1.msra.mxu0 0.0
        %568 = vmatprep.subr.mxu0 0.0
        %569 = vmatpush1.msra.mxu0 0.0
        %570 = vmatprep.subr.mxu0 0.0
        %571 = vmatpush1.msra.mxu0 0.0
        %572 = vmatprep.subr.mxu0 0.0
        %573 = vmatpush1.msra.mxu0 0.0
        %574 = vmatprep.subr.mxu0 0.0
        %575 = vmatpush1.msra.mxu0 0.0
        %576 = vmatprep.subr.mxu0 0.0
        %577 = vmatpush1.msra.mxu0 0.0
        %578 = vmatprep.subr.mxu0 0.0
        %579 = vmatpush1.msra.mxu0 0.0
        %580 = vmatprep.subr.mxu0 0.0
        %581 = vmatpush1.msra.mxu0 0.0
        %582 = vmatprep.subr.mxu0 0.0
        %583 = vmatpush1.msra.mxu0 0.0
        %584 = vmatprep.subr.mxu0 0.0
        %585 = vmatpush1.msra.mxu0 0.0
        %586 = vmatprep.subr.mxu0 0.0
        %587 = vmatpush1.msra.mxu0 0.0
        %588 = vmatprep.subr.mxu0 0.0
        %589 = vmatpush1.msra.mxu0 0.0
        %590 = vmatprep.subr.mxu0 0.0
        %591 = vmatpush1.msra.mxu0 0.0
        %592 = vmatprep.subr.mxu0 0.0
        %593 = vmatpush1.msra.mxu0 0.0
        %594 = vmatprep.subr.mxu0 0.0
        %595 = vmatpush1.msra.mxu0 0.0
        %596 = vmatprep.subr.mxu0 0.0
        %597 = vmatpush1.msra.mxu0 0.0
        %598 = vmatprep.subr.mxu0 0.0
        %599 = vmatpush1.msra.mxu0 0.0
        %600 = vmatprep.subr.mxu0 0.0
        %601 = vmatpush1.msra.mxu0 0.0
        %602 = vmatprep.subr.mxu0 0.0
        %603 = vmatpush1.msra.mxu0 0.0
        %604 = vmatprep.subr.mxu0 0.0
        %605 = vmatpush1.msra.mxu0 0.0
        %606 = vmatprep.subr.mxu0 0.0
        %607 = vmatpush1.msra.mxu0 0.0
        %608 = vmatprep.subr.mxu0 0.0
        %609 = vmatpush1.msra.mxu0 0.0
        %610 = vmatprep.subr.mxu0 0.0
        %611 = vmatpush1.msra.mxu0 0.0
        %612 = vmatprep.subr.mxu0 0.0
        %613 = vmatpush1.msra.mxu0 0.0
        %614 = vmatprep.subr.mxu0 0.0
        %615 = vmatpush1.msra.mxu0 0.0
        %616 = vmatprep.subr.mxu0 0.0
        %617 = vmatpush1.msra.mxu0 0.0
        %618 = vmatprep.mubr.f32.mxu0 0.0
        %619 = vmatmul.mubr.f32.gmra.mrb[0].mxu0 %v552
        %v620 = vpop.f32.mrb[0].mxu0
        %v621 = vadd.f32 0.0, %v620
        %v622 = vpop.f32.mrb[0].mxu0
        %623 = vdwg.mxu0
        %v624 = vld [vmem:[%s2] sm:$0xff]
        %v625 = vld [vmem:[%s2 + $0x8] sm:$0xff]
        %v626 = vld [vmem:[%s2 + $0x10] sm:$0xff]
        %v627 = vld [vmem:[%s2 + $0x18] sm:$0xff]
        %628 = vrot.lane.b32.xlu0 %v278, 112
        %v629 = vpop.permute.xlu0 %628
        %630 = vrot.lane.b32.xlu0 %v278, 80
        %v631 = vpop.permute.xlu0 %630
        %v632 = vsel %vm289, %v629, 0
        %v634 = vsel %vm289, %v631, 0
        %636 = vmatprep.subr.mxu0 0.0
        %637 = vmatpush1.xpose.msra.mxu0 %v634
        %638 = vmatprep.subr.mxu0 0.0
        %639 = vmatpush1.xpose.msra.mxu0 0.0
        %640 = vmatprep.subr.mxu0 0.0
        %641 = vmatpush1.xpose.msra.mxu0 0.0
        %642 = vmatprep.subr.mxu0 0.0
        %643 = vmatpush1.xpose.msra.mxu0 0.0
        %644 = vmatprep.subr.mxu0 0.0
        %645 = vmatpush1.xpose.msra.mxu0 0.0
        %646 = vmatprep.subr.mxu0 0.0
        %647 = vmatpush1.xpose.msra.mxu0 0.0
        %648 = vmatprep.subr.mxu0 0.0
        %649 = vmatpush1.xpose.msra.mxu0 0.0
        %650 = vmatprep.subr.mxu0 0.0
        %651 = vmatpush1.xpose.msra.mxu0 0.0
        %652 = vmatprep.subr.mxu0 0.0
        %653 = vmatpush1.xpose.msra.mxu0 0.0
        %654 = vmatprep.subr.mxu0 0.0
        %655 = vmatpush1.xpose.msra.mxu0 0.0
        %656 = vmatprep.subr.mxu0 0.0
        %657 = vmatpush1.xpose.msra.mxu0 0.0
        %658 = vmatprep.subr.mxu0 0.0
        %659 = vmatpush1.xpose.msra.mxu0 0.0
        %660 = vmatprep.subr.mxu0 0.0
        %661 = vmatpush1.xpose.msra.mxu0 0.0
        %662 = vmatprep.subr.mxu0 0.0
        %663 = vmatpush1.xpose.msra.mxu0 0.0
        %664 = vmatprep.subr.mxu0 0.0
        %665 = vmatpush1.xpose.msra.mxu0 0.0
        %666 = vmatprep.subr.mxu0 0.0
        %667 = vmatpush1.xpose.msra.mxu0 0.0
        %668 = vmatprep.subr.mxu0 0.0
        %669 = vmatpush1.xpose.msra.mxu0 0.0
        %670 = vmatprep.subr.mxu0 0.0
        %671 = vmatpush1.xpose.msra.mxu0 0.0
        %672 = vmatprep.subr.mxu0 0.0
        %673 = vmatpush1.xpose.msra.mxu0 0.0
        %674 = vmatprep.subr.mxu0 0.0
        %675 = vmatpush1.xpose.msra.mxu0 0.0
        %676 = vmatprep.subr.mxu0 0.0
        %677 = vmatpush1.xpose.msra.mxu0 0.0
        %678 = vmatprep.subr.mxu0 0.0
        %679 = vmatpush1.xpose.msra.mxu0 0.0
        %680 = vmatprep.subr.mxu0 0.0
        %681 = vmatpush1.xpose.msra.mxu0 0.0
        %682 = vmatprep.subr.mxu0 0.0
        %683 = vmatpush1.xpose.msra.mxu0 0.0
        %684 = vmatprep.subr.mxu0 0.0
        %685 = vmatpush1.xpose.msra.mxu0 0.0
        %686 = vmatprep.subr.mxu0 0.0
        %687 = vmatpush1.xpose.msra.mxu0 0.0
        %688 = vmatprep.subr.mxu0 0.0
        %689 = vmatpush1.xpose.msra.mxu0 0.0
        %690 = vmatprep.subr.mxu0 0.0
        %691 = vmatpush1.xpose.msra.mxu0 0.0
        %692 = vmatprep.subr.mxu0 0.0
        %693 = vmatpush1.xpose.msra.mxu0 0.0
        %694 = vmatprep.subr.mxu0 0.0
        %695 = vmatpush1.xpose.msra.mxu0 0.0
        %696 = vmatprep.subr.mxu0 0.0
        %697 = vmatpush1.xpose.msra.mxu0 0.0
        %698 = vmatprep.subr.mxu0 0.0
        %699 = vmatpush1.xpose.msra.mxu0 0.0
        %700 = vmatprep.mubr.f32.mxu0 0.0
        %701 = vmatmul.mubr.f32.gmra.mrb[0].mxu0 %v632
        %v702 = vpop.f32.mrb[0].mxu0
        %v703 = vadd.f32 0.0, %v702
        %v704 = vpop.f32.mrb[0].mxu0
        %705 = vdwg.mxu0
        %706 = vrot.lane.b32.xlu0 %v283, 112
        %v707 = vpop.permute.xlu0 %706
        %708 = vrot.lane.b32.xlu0 %v283, 80
        %v709 = vpop.permute.xlu0 %708
        %v710 = vsel %vm289, %v707, 0
        %v712 = vsel %vm289, %v709, 0
        %714 = vmatprep.subr.mxu0 0.0
        %715 = vmatpush1.xpose.msra.mxu0 %v712
        %716 = vmatprep.subr.mxu0 0.0
        %717 = vmatpush1.xpose.msra.mxu0 0.0
        %718 = vmatprep.subr.mxu0 0.0
        %719 = vmatpush1.xpose.msra.mxu0 0.0
        %720 = vmatprep.subr.mxu0 0.0
        %721 = vmatpush1.xpose.msra.mxu0 0.0
        %722 = vmatprep.subr.mxu0 0.0
        %723 = vmatpush1.xpose.msra.mxu0 0.0
        %724 = vmatprep.subr.mxu0 0.0
        %725 = vmatpush1.xpose.msra.mxu0 0.0
        %726 = vmatprep.subr.mxu0 0.0
        %727 = vmatpush1.xpose.msra.mxu0 0.0
        %728 = vmatprep.subr.mxu0 0.0
        %729 = vmatpush1.xpose.msra.mxu0 0.0
        %730 = vmatprep.subr.mxu0 0.0
        %731 = vmatpush1.xpose.msra.mxu0 0.0
        %732 = vmatprep.subr.mxu0 0.0
        %733 = vmatpush1.xpose.msra.mxu0 0.0
        %734 = vmatprep.subr.mxu0 0.0
        %735 = vmatpush1.xpose.msra.mxu0 0.0
        %736 = vmatprep.subr.mxu0 0.0
        %737 = vmatpush1.xpose.msra.mxu0 0.0
        %738 = vmatprep.subr.mxu0 0.0
        %739 = vmatpush1.xpose.msra.mxu0 0.0
        %740 = vmatprep.subr.mxu0 0.0
        %741 = vmatpush1.xpose.msra.mxu0 0.0
        %742 = vmatprep.subr.mxu0 0.0
        %743 = vmatpush1.xpose.msra.mxu0 0.0
        %744 = vmatprep.subr.mxu0 0.0
        %745 = vmatpush1.xpose.msra.mxu0 0.0
        %746 = vmatprep.subr.mxu0 0.0
        %747 = vmatpush1.xpose.msra.mxu0 0.0
        %748 = vmatprep.subr.mxu0 0.0
        %749 = vmatpush1.xpose.msra.mxu0 0.0
        %750 = vmatprep.subr.mxu0 0.0
        %751 = vmatpush1.xpose.msra.mxu0 0.0
        %752 = vmatprep.subr.mxu0 0.0
        %753 = vmatpush1.xpose.msra.mxu0 0.0
        %754 = vmatprep.subr.mxu0 0.0
        %755 = vmatpush1.xpose.msra.mxu0 0.0
        %756 = vmatprep.subr.mxu0 0.0
        %757 = vmatpush1.xpose.msra.mxu0 0.0
        %758 = vmatprep.subr.mxu0 0.0
        %759 = vmatpush1.xpose.msra.mxu0 0.0
        %760 = vmatprep.subr.mxu0 0.0
        %761 = vmatpush1.xpose.msra.mxu0 0.0
        %762 = vmatprep.subr.mxu0 0.0
        %763 = vmatpush1.xpose.msra.mxu0 0.0
        %764 = vmatprep.subr.mxu0 0.0
        %765 = vmatpush1.xpose.msra.mxu0 0.0
        %766 = vmatprep.subr.mxu0 0.0
        %767 = vmatpush1.xpose.msra.mxu0 0.0
        %768 = vmatprep.subr.mxu0 0.0
        %769 = vmatpush1.xpose.msra.mxu0 0.0
        %770 = vmatprep.subr.mxu0 0.0
        %771 = vmatpush1.xpose.msra.mxu0 0.0
        %772 = vmatprep.subr.mxu0 0.0
        %773 = vmatpush1.xpose.msra.mxu0 0.0
        %774 = vmatprep.subr.mxu0 0.0
        %775 = vmatpush1.xpose.msra.mxu0 0.0
        %776 = vmatprep.subr.mxu0 0.0
        %777 = vmatpush1.xpose.msra.mxu0 0.0
        %778 = vmatprep.mubr.f32.mxu0 0.0
        %779 = vmatmul.mubr.f32.gmra.mrb[0].mxu0 %v710
        %v780 = vpop.f32.mrb[0].mxu0
        %v781 = vadd.f32 0.0, %v780
        %v782 = vpop.f32.mrb[0].mxu0
        %783 = vdwg.mxu0
        %v784 = vmul.f32 %v703, 0.25
        %v785 = vmul.f32 %v781, 0.25
        %v786 = vsel %vm443, %v784, -inf
        %787 = vmax.xlane.f32.xlu0 %v786
        %v788 = vpop.xlane.xlu0 %787
        %v789 = vsel %vm443, %v785, -inf
        %790 = vmax.xlane.f32.xlu0 %v789
        %v791 = vpop.xlane.xlu0 %790
        %v792 = vsub.f32 %v784, %v788
        %v793 = vsub.f32 %v785, %v791
        %v794 = vmul.f32 %v792, 1.442695
        %v795 = vpow.pop %v794
        %v796 = vmul.f32 %v793, 1.442695
        %v797 = vpow.pop %v796
        %v798 = vsel %vm443, %v795, 0.0
        %799 = vadd.xlane.f32.xlu0 %v798
        %v800 = vpop.xlane.xlu0 %799
        %v801 = vsel %vm443, %v797, 0.0
        %802 = vadd.xlane.f32.xlu0 %v801
        %v803 = vpop.xlane.xlu0 %802
        %v804 = vrcp.pop %v800
        %v805 = vrcp.pop %v803
        %v806 = vmul.f32 %v800, %v804
        %v807 = vmul.f32 %v803, %v805
        %v808 = vsub.f32 2.0, %v806
        %v809 = vsub.f32 2.0, %v807
        %v810 = vmul.f32 %v804, %v808
        %v811 = vmul.f32 %v805, %v809
        %v812 = vmul.f32 %v795, %v810
        %v813 = vmul.f32 %v797, %v811
        %814 = vrot.lane.b32.xlu0 %v278, 48
        %v815 = vpop.permute.xlu0 %814
        %v818 = vsel %vm443, %v812, 0
        %820 = vmatprep.subr.mxu0 0.0
        %821 = vmatpush1.msra.mxu0 %v815
        %822 = vmatprep.subr.mxu0 0.0
        %823 = vmatpush1.msra.mxu0 0.0
        %824 = vmatprep.subr.mxu0 0.0
        %825 = vmatpush1.msra.mxu0 0.0
        %826 = vmatprep.subr.mxu0 0.0
        %827 = vmatpush1.msra.mxu0 0.0
        %828 = vmatprep.subr.mxu0 0.0
        %829 = vmatpush1.msra.mxu0 0.0
        %830 = vmatprep.subr.mxu0 0.0
        %831 = vmatpush1.msra.mxu0 0.0
        %832 = vmatprep.subr.mxu0 0.0
        %833 = vmatpush1.msra.mxu0 0.0
        %834 = vmatprep.subr.mxu0 0.0
        %835 = vmatpush1.msra.mxu0 0.0
        %836 = vmatprep.subr.mxu0 0.0
        %837 = vmatpush1.msra.mxu0 0.0
        %838 = vmatprep.subr.mxu0 0.0
        %839 = vmatpush1.msra.mxu0 0.0
        %840 = vmatprep.subr.mxu0 0.0
        %841 = vmatpush1.msra.mxu0 0.0
        %842 = vmatprep.subr.mxu0 0.0
        %843 = vmatpush1.msra.mxu0 0.0
        %844 = vmatprep.subr.mxu0 0.0
        %845 = vmatpush1.msra.mxu0 0.0
        %846 = vmatprep.subr.mxu0 0.0
        %847 = vmatpush1.msra.mxu0 0.0
        %848 = vmatprep.subr.mxu0 0.0
        %849 = vmatpush1.msra.mxu0 0.0
        %850 = vmatprep.subr.mxu0 0.0
        %851 = vmatpush1.msra.mxu0 0.0
        %852 = vmatprep.subr.mxu0 0.0
        %853 = vmatpush1.msra.mxu0 0.0
        %854 = vmatprep.subr.mxu0 0.0
        %855 = vmatpush1.msra.mxu0 0.0
        %856 = vmatprep.subr.mxu0 0.0
        %857 = vmatpush1.msra.mxu0 0.0
        %858 = vmatprep.subr.mxu0 0.0
        %859 = vmatpush1.msra.mxu0 0.0
        %860 = vmatprep.subr.mxu0 0.0
        %861 = vmatpush1.msra.mxu0 0.0
        %862 = vmatprep.subr.mxu0 0.0
        %863 = vmatpush1.msra.mxu0 0.0
        %864 = vmatprep.subr.mxu0 0.0
        %865 = vmatpush1.msra.mxu0 0.0
        %866 = vmatprep.subr.mxu0 0.0
        %867 = vmatpush1.msra.mxu0 0.0
        %868 = vmatprep.subr.mxu0 0.0
        %869 = vmatpush1.msra.mxu0 0.0
        %870 = vmatprep.subr.mxu0 0.0
        %871 = vmatpush1.msra.mxu0 0.0
        %872 = vmatprep.subr.mxu0 0.0
        %873 = vmatpush1.msra.mxu0 0.0
        %874 = vmatprep.subr.mxu0 0.0
        %875 = vmatpush1.msra.mxu0 0.0
        %876 = vmatprep.subr.mxu0 0.0
        %877 = vmatpush1.msra.mxu0 0.0
        %878 = vmatprep.subr.mxu0 0.0
        %879 = vmatpush1.msra.mxu0 0.0
        %880 = vmatprep.subr.mxu0 0.0
        %881 = vmatpush1.msra.mxu0 0.0
        %882 = vmatprep.subr.mxu0 0.0
        %883 = vmatpush1.msra.mxu0 0.0
        %884 = vmatprep.mubr.f32.mxu0 0.0
        %885 = vmatmul.mubr.f32.gmra.mrb[0].mxu0 %v818
        %v886 = vpop.f32.mrb[0].mxu0
        %v887 = vadd.f32 0.0, %v886
        %v888 = vpop.f32.mrb[0].mxu0
        %889 = vdwg.mxu0
        %890 = vrot.lane.b32.xlu0 %v283, 48
        %v891 = vpop.permute.xlu0 %890
        %v894 = vsel %vm443, %v813, 0
        %896 = vmatprep.subr.mxu0 0.0
        %897 = vmatpush1.msra.mxu0 %v891
        %898 = vmatprep.subr.mxu0 0.0
        %899 = vmatpush1.msra.mxu0 0.0
        %900 = vmatprep.subr.mxu0 0.0
        %901 = vmatpush1.msra.mxu0 0.0
        %902 = vmatprep.subr.mxu0 0.0
        %903 = vmatpush1.msra.mxu0 0.0
        %904 = vmatprep.subr.mxu0 0.0
        %905 = vmatpush1.msra.mxu0 0.0
        %906 = vmatprep.subr.mxu0 0.0
        %907 = vmatpush1.msra.mxu0 0.0
        %908 = vmatprep.subr.mxu0 0.0
        %909 = vmatpush1.msra.mxu0 0.0
        %910 = vmatprep.subr.mxu0 0.0
        %911 = vmatpush1.msra.mxu0 0.0
        %912 = vmatprep.subr.mxu0 0.0
        %913 = vmatpush1.msra.mxu0 0.0
        %914 = vmatprep.subr.mxu0 0.0
        %915 = vmatpush1.msra.mxu0 0.0
        %916 = vmatprep.subr.mxu0 0.0
        %917 = vmatpush1.msra.mxu0 0.0
        %918 = vmatprep.subr.mxu0 0.0
        %919 = vmatpush1.msra.mxu0 0.0
        %920 = vmatprep.subr.mxu0 0.0
        %921 = vmatpush1.msra.mxu0 0.0
        %922 = vmatprep.subr.mxu0 0.0
        %923 = vmatpush1.msra.mxu0 0.0
        %924 = vmatprep.subr.mxu0 0.0
        %925 = vmatpush1.msra.mxu0 0.0
        %926 = vmatprep.subr.mxu0 0.0
        %927 = vmatpush1.msra.mxu0 0.0
        %928 = vmatprep.subr.mxu0 0.0
        %929 = vmatpush1.msra.mxu0 0.0
        %930 = vmatprep.subr.mxu0 0.0
        %931 = vmatpush1.msra.mxu0 0.0
        %932 = vmatprep.subr.mxu0 0.0
        %933 = vmatpush1.msra.mxu0 0.0
        %934 = vmatprep.subr.mxu0 0.0
        %935 = vmatpush1.msra.mxu0 0.0
        %936 = vmatprep.subr.mxu0 0.0
        %937 = vmatpush1.msra.mxu0 0.0
        %938 = vmatprep.subr.mxu0 0.0
        %939 = vmatpush1.msra.mxu0 0.0
        %940 = vmatprep.subr.mxu0 0.0
        %941 = vmatpush1.msra.mxu0 0.0
        %942 = vmatprep.subr.mxu0 0.0
        %943 = vmatpush1.msra.mxu0 0.0
        %944 = vmatprep.subr.mxu0 0.0
        %945 = vmatpush1.msra.mxu0 0.0
        %946 = vmatprep.subr.mxu0 0.0
        %947 = vmatpush1.msra.mxu0 0.0
        %948 = vmatprep.subr.mxu0 0.0
        %949 = vmatpush1.msra.mxu0 0.0
        %950 = vmatprep.subr.mxu0 0.0
        %951 = vmatpush1.msra.mxu0 0.0
        %952 = vmatprep.subr.mxu0 0.0
        %953 = vmatpush1.msra.mxu0 0.0
        %954 = vmatprep.subr.mxu0 0.0
        %955 = vmatpush1.msra.mxu0 0.0
        %956 = vmatprep.subr.mxu0 0.0
        %957 = vmatpush1.msra.mxu0 0.0
        %958 = vmatprep.subr.mxu0 0.0
        %959 = vmatpush1.msra.mxu0 0.0
        %960 = vmatprep.mubr.f32.mxu0 0.0
        %961 = vmatmul.mubr.f32.gmra.mrb[0].mxu0 %v894
        %v962 = vpop.f32.mrb[0].mxu0
        %v963 = vadd.f32 0.0, %v962
        %v964 = vpop.f32.mrb[0].mxu0
        %965 = vdwg.mxu0
        %v966 = vld [vmem:[%s2 + $0x20] sm:$0xff]
        %v967 = vld [vmem:[%s2 + $0x28] sm:$0xff]
        %v968 = vld [vmem:[%s2 + $0x30] sm:$0xff]
        %v969 = vld [vmem:[%s2 + $0x38] sm:$0xff]
        %v971 = vsel %vm289, %v887, 0
        %v974 = vsel %vm289, %v963, 0
        %976 = vmatprep.subr.mxu0 %v967
        %977 = vmatpush1.msra.mxu0 %v966
        %978 = vmatprep.subr.mxu0 %v969
        %979 = vmatpush1.msra.mxu0 %v968
        %980 = vmatprep.subr.mxu0 0.0
        %981 = vmatpush1.msra.mxu0 0.0
        %982 = vmatprep.subr.mxu0 0.0
        %983 = vmatpush1.msra.mxu0 0.0
        %984 = vmatprep.subr.mxu0 0.0
        %985 = vmatpush1.msra.mxu0 0.0
        %986 = vmatprep.subr.mxu0 0.0
        %987 = vmatpush1.msra.mxu0 0.0
        %988 = vmatprep.subr.mxu0 0.0
        %989 = vmatpush1.msra.mxu0 0.0
        %990 = vmatprep.subr.mxu0 0.0
        %991 = vmatpush1.msra.mxu0 0.0
        %992 = vmatprep.subr.mxu0 0.0
        %993 = vmatpush1.msra.mxu0 0.0
        %994 = vmatprep.subr.mxu0 0.0
        %995 = vmatpush1.msra.mxu0 0.0
        %996 = vmatprep.subr.mxu0 0.0
        %997 = vmatpush1.msra.mxu0 0.0
        %998 = vmatprep.subr.mxu0 0.0
        %999 = vmatpush1.msra.mxu0 0.0
        %1000 = vmatprep.subr.mxu0 0.0
        %1001 = vmatpush1.msra.mxu0 0.0
        %1002 = vmatprep.subr.mxu0 0.0
        %1003 = vmatpush1.msra.mxu0 0.0
        %1004 = vmatprep.subr.mxu0 0.0
        %1005 = vmatpush1.msra.mxu0 0.0
        %1006 = vmatprep.subr.mxu0 0.0
        %1007 = vmatpush1.msra.mxu0 0.0
        %1008 = vmatprep.subr.mxu0 0.0
        %1009 = vmatpush1.msra.mxu0 0.0
        %1010 = vmatprep.subr.mxu0 0.0
        %1011 = vmatpush1.msra.mxu0 0.0
        %1012 = vmatprep.subr.mxu0 0.0
        %1013 = vmatpush1.msra.mxu0 0.0
        %1014 = vmatprep.subr.mxu0 0.0
        %1015 = vmatpush1.msra.mxu0 0.0
        %1016 = vmatprep.subr.mxu0 0.0
        %1017 = vmatpush1.msra.mxu0 0.0
        %1018 = vmatprep.subr.mxu0 0.0
        %1019 = vmatpush1.msra.mxu0 0.0
        %1020 = vmatprep.subr.mxu0 0.0
        %1021 = vmatpush1.msra.mxu0 0.0
        %1022 = vmatprep.subr.mxu0 0.0
        %1023 = vmatpush1.msra.mxu0 0.0
        %1024 = vmatprep.subr.mxu0 0.0
        %1025 = vmatpush1.msra.mxu0 0.0
        %1026 = vmatprep.subr.mxu0 0.0
        %1027 = vmatpush1.msra.mxu0 0.0
        %1028 = vmatprep.subr.mxu0 0.0
        %1029 = vmatpush1.msra.mxu0 0.0
        %1030 = vmatprep.subr.mxu0 0.0
        %1031 = vmatpush1.msra.mxu0 0.0
        %1032 = vmatprep.subr.mxu0 0.0
        %1033 = vmatpush1.msra.mxu0 0.0
        %1034 = vmatprep.subr.mxu0 0.0
        %1035 = vmatpush1.msra.mxu0 0.0
        %1036 = vmatprep.subr.mxu0 0.0
        %1037 = vmatpush1.msra.mxu0 0.0
        %1038 = vmatprep.subr.mxu0 0.0
        %1039 = vmatpush1.msra.mxu0 0.0
        %1040 = vmatprep.mubr.f32.mxu0 0.0
        %1041 = vmatmul.mubr.f32.gmra.mrb[0].mxu0 %v971
        %v1042 = vpop.f32.mrb[0].mxu0
        %v1043 = vadd.f32 0.0, %v1042
        %v1044 = vpop.f32.mrb[0].mxu0
        %v1045 = vadd.f32 0.0, %v1044
        %1046 = vmatprep.mubr.f32.mxu0 0.0
        %1047 = vmatmul.mubr.f32.gmra.mrb[0].mxu0 %v974
        %v1048 = vpop.f32.mrb[0].mxu0
        %v1049 = vadd.f32 0.0, %v1048
        %v1050 = vpop.f32.mrb[0].mxu0
        %v1051 = vadd.f32 0.0, %v1050
        %1052 = vdwg.mxu0
        %v1054 = vsel %vm289, %v545, 0
        %v1057 = vsel %vm289, %v621, 0
        %1059 = vmatprep.subr.mxu0 %v625
        %1060 = vmatpush1.msra.mxu0 %v624
        %1061 = vmatprep.subr.mxu0 %v627
        %1062 = vmatpush1.msra.mxu0 %v626
        %1063 = vmatprep.subr.mxu0 0.0
        %1064 = vmatpush1.msra.mxu0 0.0
        %1065 = vmatprep.subr.mxu0 0.0
        %1066 = vmatpush1.msra.mxu0 0.0
        %1067 = vmatprep.subr.mxu0 0.0
        %1068 = vmatpush1.msra.mxu0 0.0
        %1069 = vmatprep.subr.mxu0 0.0
        %1070 = vmatpush1.msra.mxu0 0.0
        %1071 = vmatprep.subr.mxu0 0.0
        %1072 = vmatpush1.msra.mxu0 0.0
        %1073 = vmatprep.subr.mxu0 0.0
        %1074 = vmatpush1.msra.mxu0 0.0
        %1075 = vmatprep.subr.mxu0 0.0
        %1076 = vmatpush1.msra.mxu0 0.0
        %1077 = vmatprep.subr.mxu0 0.0
        %1078 = vmatpush1.msra.mxu0 0.0
        %1079 = vmatprep.subr.mxu0 0.0
        %1080 = vmatpush1.msra.mxu0 0.0
        %1081 = vmatprep.subr.mxu0 0.0
        %1082 = vmatpush1.msra.mxu0 0.0
        %1083 = vmatprep.subr.mxu0 0.0
        %1084 = vmatpush1.msra.mxu0 0.0
        %1085 = vmatprep.subr.mxu0 0.0
        %1086 = vmatpush1.msra.mxu0 0.0
        %1087 = vmatprep.subr.mxu0 0.0
        %1088 = vmatpush1.msra.mxu0 0.0
        %1089 = vmatprep.subr.mxu0 0.0
        %1090 = vmatpush1.msra.mxu0 0.0
        %1091 = vmatprep.subr.mxu0 0.0
        %1092 = vmatpush1.msra.mxu0 0.0
        %1093 = vmatprep.subr.mxu0 0.0
        %1094 = vmatpush1.msra.mxu0 0.0
        %1095 = vmatprep.subr.mxu0 0.0
        %1096 = vmatpush1.msra.mxu0 0.0
        %1097 = vmatprep.subr.mxu0 0.0
        %1098 = vmatpush1.msra.mxu0 0.0
        %1099 = vmatprep.subr.mxu0 0.0
        %1100 = vmatpush1.msra.mxu0 0.0
        %1101 = vmatprep.subr.mxu0 0.0
        %1102 = vmatpush1.msra.mxu0 0.0
        %1103 = vmatprep.subr.mxu0 0.0
        %1104 = vmatpush1.msra.mxu0 0.0
        %1105 = vmatprep.subr.mxu0 0.0
        %1106 = vmatpush1.msra.mxu0 0.0
        %1107 = vmatprep.subr.mxu0 0.0
        %1108 = vmatpush1.msra.mxu0 0.0
        %1109 = vmatprep.subr.mxu0 0.0
        %1110 = vmatpush1.msra.mxu0 0.0
        %1111 = vmatprep.subr.mxu0 0.0
        %1112 = vmatpush1.msra.mxu0 0.0
        %1113 = vmatprep.subr.mxu0 0.0
        %1114 = vmatpush1.msra.mxu0 0.0
        %1115 = vmatprep.subr.mxu0 0.0
        %1116 = vmatpush1.msra.mxu0 0.0
        %1117 = vmatprep.subr.mxu0 0.0
        %1118 = vmatpush1.msra.mxu0 0.0
        %1119 = vmatprep.subr.mxu0 0.0
        %1120 = vmatpush1.msra.mxu0 0.0
        %1121 = vmatprep.subr.mxu0 0.0
        %1122 = vmatpush1.msra.mxu0 0.0
        %1123 = vmatprep.mubr.f32.mxu0 0.0
        %1124 = vmatmul.mubr.f32.gmra.mrb[0].mxu0 %v1054
        %v1125 = vpop.f32.mrb[0].mxu0
        %v1126 = vadd.f32 %v1043, %v1125
        %v1127 = vpop.f32.mrb[0].mxu0
        %v1128 = vadd.f32 %v1045, %v1127
        %1129 = vmatprep.mubr.f32.mxu0 0.0
        %1130 = vmatmul.mubr.f32.gmra.mrb[0].mxu0 %v1057
        %v1131 = vpop.f32.mrb[0].mxu0
        %v1132 = vadd.f32 %v1049, %v1131
        %v1133 = vpop.f32.mrb[0].mxu0
        %v1134 = vadd.f32 %v1051, %v1133
        %1135 = vdwg.mxu0
        %v1136 = vadd.f32 %v1126, %v175
        %v1137 = vadd.f32 %v1128, %v176
        %v1138 = vadd.f32 %v1132, %v177
        %v1139 = vadd.f32 %v1134, %v178
        %1140 = vst [vmem:[%s166] sm:$0xff] %v1136
        %1141 = vst [vmem:[%s166 + $0x8] sm:$0xff] %v1137
        %1142 = vst [vmem:[%s166 + $0x10] sm:$0xff] %v1138
        %1143 = vst [vmem:[%s166 + $0x18] sm:$0xff] %v1139
        %s1144 = sand.u32 %s93, 1
        %s1145 = scalar_lea.sflag [#allocation3], %s1144
        %s1146 = sand.u32 %s93, 1
        %s1147 = smul.addr %s1146, 32
        %s1148 = scalar_lea.vmem [#allocation2], %s1147
        // Predicated region
        $region33: #{tpu_custom_call.1} parent=31 // pred_check
          %p1149 = pneg %p103
        $region34: #{tpu_custom_call.1} parent=31 // pred_check_branch
          %1151 = sbr.rel (%p1149) target = $region36
        $region35: #{tpu_custom_call.1} parent=31 // pred_region
          %s1152 = smul.u32 2, %s17
          %s1154 = ssub.s32 512, 512
          %1155 = vsyncadd %s1145, %s1154
          %s1156 = smul.addr %s1152, 2
          %s1157 = smul.addr %s1156, 128
          %s1158 = scalar_lea.hbm %s3, %s1157
          %s1159 = sshll.u32 %s1148, 4
          %s1160 = int_to_ptr.vmem [resolvable:$true] %s1159
          %1165 = dma.vmem_to_hbm [thread:$0]  %s1160, 512, %s1158, %s1145, 256, 256, 16
        $region36: #{tpu_custom_call.1} parent=31 // pred_fallthru
          _
      $region32: #{tpu_custom_call.1} parent=5 // pred_fallthru
        _
      %p1166 = scmp.le.s32.totalorder 2, %s12
      // Predicated region
      $region37: #{tpu_custom_call.1} parent=5 // pred_check
        %p1167 = pneg %p1166
      $region38: #{tpu_custom_call.1} parent=5 // pred_check_branch
        %1169 = sbr.rel (%p1167) target = $region40
      $region39: #{tpu_custom_call.1} parent=5 // pred_region
        %s1170 = ssub.s32 %s12, 2
        // Predicated region
        $region41: #{tpu_custom_call.1} parent=39 // pred_check
          %p1171 = pneg %p109
        $region42: #{tpu_custom_call.1} parent=39 // pred_check_branch
          %1173 = sbr.rel (%p1171) target = $region44
        $region43: #{tpu_custom_call.1} parent=39 // pred_region
          %s1174 = sand.u32 %s94, 1
          %s1175 = scalar_lea.sflag [#allocation3], %s1174
          %s1176 = sand.u32 %s94, 1
          %s1177 = smul.addr %s1176, 32
          %s1178 = scalar_lea.vmem [#allocation2], %s1177
          %1179 = dma.done %s1175, 512
        $region44: #{tpu_custom_call.1} parent=39 // pred_fallthru
          _
      $region40: #{tpu_custom_call.1} parent=5 // pred_fallthru
        _
    $region6: #{tpu_custom_call.1} parent=1 // loop_footer
      %s16 = sadd.s32 1, %s12
    $region7: #{tpu_custom_call.1} parent=1 // loop_footer_branch
      %11 = sbr.rel target = $region3
    $region8: #{tpu_custom_call.1} parent=1 // loop_exit
      _
    %1180 = vsyncpa [#allocation3], 1
    %s1181 = scalar_lea.sflag [#allocation3], 1
    %1182 = vsyncpa %s1181, 1

</llo_original>
